<compile_context>
chip_gen: v5e
topology: v5e:2x2
jax: 0.10.0
libtpu: 0.0.40
codegen_flags: <defaults>
</compile_context>

<pallas_src>
import jax
import jax.numpy as jnp
from jax import lax
from jax.experimental import pallas as pl
from jax.experimental.pallas import tpu as pltpu

EPS = 1e-6
NEG_INF = -1e9


def _layernorm(x, g, b):
    # torch.nn.LayerNorm over last dim, biased variance, eps=1e-6 (f32 math)
    mean = jnp.mean(x, axis=-1, keepdims=True)
    var = jnp.mean((x - mean) ** 2, axis=-1, keepdims=True)
    return (x - mean) * lax.rsqrt(var + EPS) * g + b


def _pick_tile(s, candidates=(512, 256, 128)):
    for t in candidates:
        if s % t == 0:
            return t
    return s


# ----------------------------------------------------------------------------
# Kernel 1: positional encoding add + LayerNorm (dropout = identity in eval)
# ----------------------------------------------------------------------------
def add_pos_ln_kernel(x_ref, pos_ref, g_ref, b_ref, o_ref):
    x = x_ref[0] + pos_ref[0]                       # (TS, D)
    o_ref[0] = _layernorm(x, g_ref[...], b_ref[...])


def add_pos_layernorm(x, pos, g, b):
    B, S, D = x.shape
    ts = _pick_tile(S)
    return pl.pallas_call(
        add_pos_ln_kernel,
        out_shape=jax.ShapeDtypeStruct((B, S, D), jnp.float32),
        grid_spec=pltpu.PrefetchScalarGridSpec(
            num_scalar_prefetch=0,
            grid=(B, S // ts),
            in_specs=[
                pl.BlockSpec((1, ts, D), lambda b, s: (b, s, 0)),
                pl.BlockSpec((1, ts, D), lambda b, s: (0, s, 0)),
                pl.BlockSpec((1, D), lambda b, s: (0, 0)),
                pl.BlockSpec((1, D), lambda b, s: (0, 0)),
            ],
            out_specs=pl.BlockSpec((1, ts, D), lambda b, s: (b, s, 0)),
        ),
        compiler_params=pltpu.CompilerParams(
            dimension_semantics=("parallel", "parallel")),
    )(x, pos, g, b)


# ----------------------------------------------------------------------------
# Kernel 2: one full EncoderLayer (MHA + FFN, post-norm), grid over (B, q-tile)
# ----------------------------------------------------------------------------
def make_encoder_layer_kernel(n_head, d_k, d_v):
    hdk = n_head * d_k

    def kernel(xq_ref, xkv_ref, bias_ref,
               wq_ref, wkv_ref, wo_ref,
               ln1g_ref, ln1b_ref, w1_ref, b1_ref, w2_ref, b2_ref,
               ln2g_ref, ln2b_ref, o_ref):
        xq = xq_ref[0]            # (TQ, D) f32 query rows (also the residual)
        xkv = xkv_ref[0]          # (S, D)  f32 full sequence for K/V
        bias = bias_ref[0]        # (1, S)  f32 additive mask bias (0 / -1e9)

        xq_b = xq.astype(jnp.bfloat16)
        xkv_b = xkv.astype(jnp.bfloat16)

        # Full-width projections on the MXU (contraction K = D).
        # 1/sqrt(d_k) is already folded into wq by the wrapper; K and V share a
        # single fused matmul (wkv = [Wk | Wv], N = n_head*(d_k+d_v)).
        q = jnp.dot(xq_b, wq_ref[...], preferred_element_type=jnp.float32)
        kv = jnp.dot(xkv_b, wkv_ref[...], preferred_element_type=jnp.float32)

        # Cast once; per-head slices below reuse these bf16 tiles.
        q_b = q.astype(jnp.bfloat16)
        kv_b = kv.astype(jnp.bfloat16)

        # Per-head scaled dot-product attention.  Heads are an unrolled static
        # loop: each head is independent (no serial accumulation chain) and a
        # head-batched dot_general would require a head-major relayout
        # (transpose across the tiled sublane dim) that Mosaic handles poorly;
        # the QK^T / PV matmul shapes are identical either way.
        ctx_heads = []
        for h in range(n_head):
            qh = q_b[:, h * d_k:(h + 1) * d_k]
            kh = kv_b[:, h * d_k:(h + 1) * d_k]
            vh = kv_b[:, hdk + h * d_v: hdk + (h + 1) * d_v]
            s = lax.dot_general(qh, kh, (((1,), (1,)), ((), ())),
                                preferred_element_type=jnp.float32)  # (TQ, S)
            s = s + bias                                # hoisted additive mask
            s = s - jnp.max(s, axis=-1, keepdims=True)  # f32 softmax
            p = jnp.exp(s)
            p = p * pl.reciprocal(jnp.sum(p, axis=-1, keepdims=True),
                                  approx=True)
            ctx_heads.append(jnp.dot(p.astype(jnp.bfloat16), vh,
                                     preferred_element_type=jnp.float32))
        # concat(heads) -> single full-contraction output projection (K=H*d_v)
        ctx = jnp.concatenate(ctx_heads, axis=-1).astype(jnp.bfloat16)
        attn = jnp.dot(ctx, wo_ref[...], preferred_element_type=jnp.float32)

        y = _layernorm(attn + xq, ln1g_ref[...], ln1b_ref[...])

        # Position-wise feed-forward: bf16 matmuls, f32 accumulation/epilogue.
        h1 = jnp.dot(y.astype(jnp.bfloat16), w1_ref[...],
                     preferred_element_type=jnp.float32) + b1_ref[...]
        h1 = jnp.maximum(h1, 0.0)
        h2 = jnp.dot(h1.astype(jnp.bfloat16), w2_ref[...],
                     preferred_element_type=jnp.float32) + b2_ref[...]
        o_ref[0] = _layernorm(h2 + y, ln2g_ref[...], ln2b_ref[...])

    return kernel


# Single-buffer the grid-invariant weight blocks (they never change across the
# grid, so double-buffering only wastes VMEM).  Falls back automatically if the
# installed jax does not accept pipeline_mode=pl.Buffered(1).
_SINGLE_BUFFER_WEIGHTS = [True]


def _const_spec(shape, single_buffer):
    idx = lambda *_: (0,) * len(shape)
    if single_buffer:
        return pl.BlockSpec(shape, idx, pipeline_mode=pl.Buffered(1))
    return pl.BlockSpec(shape, idx)


def _encoder_layer_call(x, bias, lp, n_head, d_k, d_v, single_buffer):
    B, S, D = x.shape
    d_inner = lp["w1"].shape[1]
    hdk = n_head * d_k
    hdv = n_head * d_v
    tq = _pick_tile(S)
    scale = 1.0 / (d_k ** 0.5)

    # bf16 matmul operands (accumulation stays f32 inside the kernel);
    # attention scale folded into wq, K/V weights fused, at trace time.
    wq = (lp["wq"] * scale).astype(jnp.bfloat16)
    wkv = jnp.concatenate([lp["wk"], lp["wv"]], axis=1).astype(jnp.bfloat16)
    wo = lp["wo"].astype(jnp.bfloat16)
    w1 = lp["w1"].astype(jnp.bfloat16)
    w2 = lp["w2"].astype(jnp.bfloat16)

    cs = lambda shape: _const_spec(shape, single_buffer)

    grid_spec = pltpu.PrefetchScalarGridSpec(
        num_scalar_prefetch=0,
        grid=(B, S // tq),
        in_specs=[
            pl.BlockSpec((1, tq, D), lambda b, q: (b, q, 0)),   # query rows
            pl.BlockSpec((1, S, D), lambda b, q: (b, 0, 0)),    # full seq (K/V)
            pl.BlockSpec((1, 1, S), lambda b, q: (b, 0, 0)),    # mask bias
            cs((D, hdk)),                                       # wq (scaled)
            cs((D, hdk + hdv)),                                 # [wk | wv]
            cs((hdv, D)),                                       # wo
            cs((1, D)), cs((1, D)),                             # ln1 g/b
            cs((D, d_inner)), cs((1, d_inner)),                 # w1, b1
            cs((d_inner, D)), cs((1, D)),                       # w2, b2
            cs((1, D)), cs((1, D)),                             # ln2 g/b
        ],
        out_specs=pl.BlockSpec((1, tq, D), lambda b, q: (b, q, 0)),
    )

    return pl.pallas_call(
        make_encoder_layer_kernel(n_head, d_k, d_v),
        out_shape=jax.ShapeDtypeStruct((B, S, D), jnp.float32),
        grid_spec=grid_spec,
        compiler_params=pltpu.CompilerParams(
            dimension_semantics=("parallel", "parallel"),
            # above the 16/32 MiB scoped defaults, under v7x's 64 MiB physical
            vmem_limit_bytes=48 * 1024 * 1024),
    )(x, x, bias,
      wq, wkv, wo,
      lp["ln1_g"], lp["ln1_b"],
      w1, lp["b1"], w2, lp["b2"],
      lp["ln2_g"], lp["ln2_b"])


def encoder_layer(x, bias, lp, n_head, d_k, d_v):
    if _SINGLE_BUFFER_WEIGHTS[0]:
        try:
            return _encoder_layer_call(x, bias, lp, n_head, d_k, d_v, True)
        except Exception:
            _SINGLE_BUFFER_WEIGHTS[0] = False   # fall back: double-buffered
    return _encoder_layer_call(x, bias, lp, n_head, d_k, d_v, False)


# ----------------------------------------------------------------------------
# Parameter setup (deterministic), positional table, and the full Encoder fwd
# ----------------------------------------------------------------------------
def sinusoid_table(n_position, d_word_vec):
    pos = jnp.arange(n_position, dtype=jnp.float32)[:, None]            # (P,1)
    hid = jnp.arange(d_word_vec)[None, :]                               # (1,D)
    angle = pos / jnp.power(10000.0, (2 * (hid // 2)).astype(jnp.float32)
                            / d_word_vec)
    table = jnp.where(hid % 2 == 0, jnp.sin(angle), jnp.cos(angle))
    return table[None].astype(jnp.float32)                              # (1,P,D)


def init_params(key, n_src_vocab, d_word_vec, n_layers, n_head, d_k, d_v,
                d_model, d_inner, pad_idx, n_position):
    keys = jax.random.split(key, 2 + 6 * n_layers)
    ki = iter(keys)
    scale = 0.02

    emb = scale * jax.random.normal(next(ki), (n_src_vocab, d_word_vec),
                                    jnp.float32)
    emb = emb.at[pad_idx].set(0.0)  # padding_idx row is zeros

    params = {
        "emb": emb,
        "pos_table": sinusoid_table(n_position, d_word_vec),
        "ln_g": jnp.ones((1, d_model), jnp.float32),
        "ln_b": jnp.zeros((1, d_model), jnp.float32),
        "layers": [],
    }
    for _ in range(n_layers):
        layer = {
            "wq": scale * jax.random.normal(next(ki), (d_model, n_head * d_k)),
            "wk": scale * jax.random.normal(next(ki), (d_model, n_head * d_k)),
            "wv": scale * jax.random.normal(next(ki), (d_model, n_head * d_v)),
            "wo": scale * jax.random.normal(next(ki), (n_head * d_v, d_model)),
            "ln1_g": jnp.ones((1, d_model), jnp.float32),
            "ln1_b": jnp.zeros((1, d_model), jnp.float32),
            "w1": scale * jax.random.normal(next(ki), (d_model, d_inner)),
            "b1": jnp.zeros((1, d_inner), jnp.float32),
            "w2": scale * jax.random.normal(next(ki), (d_inner, d_model)),
            "b2": jnp.zeros((1, d_model), jnp.float32),
            "ln2_g": jnp.ones((1, d_model), jnp.float32),
            "ln2_b": jnp.zeros((1, d_model), jnp.float32),
        }
        layer = {k: v.astype(jnp.float32) for k, v in layer.items()}
        params["layers"].append(layer)
    return params


def encoder_forward(src_seq, src_mask, params, n_head, d_k, d_v,
                    scale_emb=False, d_model=None):
    B, S = src_seq.shape
    # embedding lookup (glue: plain JAX gather)
    x = params["emb"][src_seq].astype(jnp.float32)       # (B,S,D)
    if scale_emb:
        x = x * (d_model ** 0.5)
    pos = params["pos_table"][:, :S]                     # (1,S,D)
    # dropout = identity in eval mode
    x = add_pos_layernorm(x, pos, params["ln_g"], params["ln_b"])
    # additive attention-mask bias, computed ONCE (hoisted out of the kernels)
    bias = jnp.where(src_mask, 0.0, NEG_INF).astype(jnp.float32)   # (B,1,S)
    for layer_params in params["layers"]:
        x = encoder_layer(x, bias, layer_params, n_head, d_k, d_v)
    return x


if __name__ == "__main__":
    # small, lane-dense (multiple-of-128 feature dims), forward-consistent
    n_src_vocab = 32
    d_word_vec = d_model = 128
    n_layers = 2
    n_head = 4
    d_k = d_v = 32
    d_inner = 256
    pad_idx = 0
    n_position = 64
    B, S = 2, 16

    key = jax.random.PRNGKey(0)
    pkey, skey = jax.random.split(key)
    params = init_params(pkey, n_src_vocab, d_word_vec, n_layers, n_head,
                         d_k, d_v, d_model, d_inner, pad_idx, n_position)

    src_seq = jax.random.randint(skey, (B, S), 1, n_src_vocab, dtype=jnp.int32)
    # pad the tail of the second sequence to exercise the mask
    src_seq = src_seq.at[1, -4:].set(pad_idx)
    src_mask = (src_seq != pad_idx)[:, None, :]          # (B, 1, S) bool

    out = encoder_forward(src_seq, src_mask, params, n_head, d_k, d_v,
                          scale_emb=False, d_model=d_model)
    jax.block_until_ready(out)
    assert out.shape == (B, S, d_model) and out.dtype == jnp.float32
    assert bool(jnp.all(jnp.isfinite(out)))
    print("KERNEL_OK")
</pallas_src>

<mosaic_0001>
module attributes {stable_mosaic.version = 11 : i64} {
  func.func @add_pos_ln_kernel(%arg0: i32, %arg1: i32, %arg2: memref<1x16x128xf32, #tpu.memory_space<vmem>>, %arg3: memref<1x16x128xf32, #tpu.memory_space<vmem>>, %arg4: memref<1x128xf32, #tpu.memory_space<vmem>>, %arg5: memref<1x128xf32, #tpu.memory_space<vmem>>, %arg6: memref<1x16x128xf32, #tpu.memory_space<vmem>>) attributes {dimension_semantics = [#tpu.dimension_semantics<parallel>, #tpu.dimension_semantics<parallel>], iteration_bounds = array<i64: 2, 1>, scalar_prefetch = 0 : i64, scratch_operands = 0 : i64, tpu.core_type = #tpu.core_type<tc>, window_params = [{transform_indices = @transform_0, window_bounds = array<i64: 1, 16, 128>}, {transform_indices = @transform_1, window_bounds = array<i64: 1, 16, 128>}, {pipeline_mode = #tpu.pipeline_mode<synchronous>, transform_indices = @transform_2, window_bounds = array<i64: 1, 128>}, {pipeline_mode = #tpu.pipeline_mode<synchronous>, transform_indices = @transform_3, window_bounds = array<i64: 1, 128>}, {transform_indices = @transform_4, window_bounds = array<i64: 1, 16, 128>}]} {
    %c0 = arith.constant 0 : index
    %c0_0 = arith.constant 0 : index
    %c0_1 = arith.constant 0 : index
    %0 = vector.load %arg2[%c0, %c0_0, %c0_1] : memref<1x16x128xf32, #tpu.memory_space<vmem>>, vector<1x16x128xf32>
    %1 = vector.shape_cast %0 : vector<1x16x128xf32> to vector<16x128xf32>
    %c0_2 = arith.constant 0 : index
    %c0_3 = arith.constant 0 : index
    %c0_4 = arith.constant 0 : index
    %2 = vector.load %arg3[%c0_2, %c0_3, %c0_4] : memref<1x16x128xf32, #tpu.memory_space<vmem>>, vector<1x16x128xf32>
    %3 = vector.shape_cast %2 : vector<1x16x128xf32> to vector<16x128xf32>
    %4 = arith.addf %1, %3 : vector<16x128xf32>
    %c0_5 = arith.constant 0 : index
    %c0_6 = arith.constant 0 : index
    %5 = vector.load %arg4[%c0_5, %c0_6] : memref<1x128xf32, #tpu.memory_space<vmem>>, vector<1x128xf32>
    %c0_7 = arith.constant 0 : index
    %c0_8 = arith.constant 0 : index
    %6 = vector.load %arg5[%c0_7, %c0_8] : memref<1x128xf32, #tpu.memory_space<vmem>>, vector<1x128xf32>
    %cst = arith.constant dense<0.000000e+00> : vector<16xf32>
    %7 = vector.multi_reduction <add>, %4, %cst [1] : vector<16x128xf32> to vector<16xf32>
    %8 = vector.shape_cast %7 : vector<16xf32> to vector<16x1xf32>
    %cst_9 = arith.constant 1.280000e+02 : f32
    %9 = vector.broadcast %cst_9 : f32 to vector<16x1xf32>
    %10 = arith.divf %8, %9 : vector<16x1xf32>
    %11 = vector.broadcast %10 : vector<16x1xf32> to vector<16x128xf32>
    %12 = arith.subf %4, %11 : vector<16x128xf32>
    %13 = arith.mulf %12, %12 : vector<16x128xf32>
    %cst_10 = arith.constant dense<0.000000e+00> : vector<16xf32>
    %14 = vector.multi_reduction <add>, %13, %cst_10 [1] : vector<16x128xf32> to vector<16xf32>
    %15 = vector.shape_cast %14 : vector<16xf32> to vector<16x1xf32>
    %cst_11 = arith.constant 1.280000e+02 : f32
    %16 = vector.broadcast %cst_11 : f32 to vector<16x1xf32>
    %17 = arith.divf %15, %16 : vector<16x1xf32>
    %18 = vector.broadcast %10 : vector<16x1xf32> to vector<16x128xf32>
    %19 = arith.subf %4, %18 : vector<16x128xf32>
    %cst_12 = arith.constant 9.99999997E-7 : f32
    %20 = vector.broadcast %cst_12 : f32 to vector<16x1xf32>
    %21 = arith.addf %17, %20 : vector<16x1xf32>
    %22 = math.rsqrt %21 : vector<16x1xf32>
    %23 = vector.broadcast %22 : vector<16x1xf32> to vector<16x128xf32>
    %24 = arith.mulf %19, %23 : vector<16x128xf32>
    %25 = vector.broadcast %5 : vector<1x128xf32> to vector<16x128xf32>
    %26 = arith.mulf %24, %25 : vector<16x128xf32>
    %27 = vector.broadcast %6 : vector<1x128xf32> to vector<16x128xf32>
    %28 = arith.addf %26, %27 : vector<16x128xf32>
    %c0_13 = arith.constant 0 : index
    %c0_14 = arith.constant 0 : index
    %c0_15 = arith.constant 0 : index
    %29 = vector.load %arg6[%c0_13, %c0_14, %c0_15] : memref<1x16x128xf32, #tpu.memory_space<vmem>>, vector<1x16x128xf32>
    %30 = vector.shape_cast %29 : vector<1x16x128xf32> to vector<16x128xf32>
    %31 = vector.shape_cast %28 : vector<16x128xf32> to vector<1x16x128xf32>
    tpu.vector_store %arg6[%c0_13, %c0_14, %c0_15], %31 {strides = array<i32>} : memref<1x16x128xf32, #tpu.memory_space<vmem>>, vector<1x16x128xf32>,
    return
  }
  func.func @transform_0(%arg0: i32, %arg1: i32) -> (i32, i32, i32) {
    %c0_i32 = arith.constant 0 : i32
    %c0_i32_0 = arith.constant 0 : i32
    return %arg0, %arg1, %c0_i32 : i32, i32, i32
  }
  func.func @transform_1(%arg0: i32, %arg1: i32) -> (i32, i32, i32) {
    %c0_i32 = arith.constant 0 : i32
    %c0_i32_0 = arith.constant 0 : i32
    %c0_i32_1 = arith.constant 0 : i32
    return %c0_i32, %arg1, %c0_i32_0 : i32, i32, i32
  }
  func.func @transform_2(%arg0: i32, %arg1: i32) -> (i32, i32) {
    %c0_i32 = arith.constant 0 : i32
    %c0_i32_0 = arith.constant 0 : i32
    %c0_i32_1 = arith.constant 0 : i32
    return %c0_i32, %c0_i32_0 : i32, i32
  }
  func.func @transform_3(%arg0: i32, %arg1: i32) -> (i32, i32) {
    %c0_i32 = arith.constant 0 : i32
    %c0_i32_0 = arith.constant 0 : i32
    %c0_i32_1 = arith.constant 0 : i32
    return %c0_i32, %c0_i32_0 : i32, i32
  }
  func.func @transform_4(%arg0: i32, %arg1: i32) -> (i32, i32, i32) {
    %c0_i32 = arith.constant 0 : i32
    %c0_i32_0 = arith.constant 0 : i32
    return %arg0, %arg1, %c0_i32 : i32, i32, i32
  }
}

</mosaic_0001>

<llo_original>
// kernel: tpu_custom_call.1
$region0: #{tpu_custom_call.1}
  #allocation0 [shape = 'u32[]', space=smem, size = 0x4, offset = 0x4, fixed_abs, tag = 'smem constant byte address 0x4 - core index']
  #allocation1 [shape = 'u32[72,128]{1,0:T(1,128)}', space=vmem, size = 0x9000, scoped, tag = 'internal scratch']
  %s0 = inlined_call_operand.hbm [shape: f32[2,16,128], index: 0, kind: input, shape index: {}]
  %s1 = inlined_call_operand.hbm [shape: f32[1,16,128], index: 1, kind: input, shape index: {}]
  %s2 = inlined_call_operand.vmem [shape: f32[1,128], index: 2, kind: input, shape index: {}]
  %s3 = inlined_call_operand.vmem [shape: f32[1,128], index: 3, kind: input, shape index: {}]
  %s4 = inlined_call_operand.hbm [shape: f32[2,16,128], index: 4, kind: output, shape index: {}]
  %s5 = sld [smem:[#allocation0]]
  $region57: #{tpu_custom_call.1} parent=0
    _
  %s7 = ssub.s32 1, %s5
  %s8 = scalar_select 0, %s7, %s5
  $region1: #{tpu_custom_call.1} parent=0
    #allocation2 [shape = 'u8[16384]{0}', space=vmem, size = 0x4000, scoped, tag = 'input window, operand 0']
    #allocation3 [shape = 's32[2]{0}', space=sflag, size = 0x8, scoped, tag = 'scoped memory for tpu_custom_call.1']
    #allocation4 [shape = 's32[2]{0}', space=sflag, size = 0x8, scoped, tag = 'scoped memory for tpu_custom_call.1']
    #allocation5 [shape = 'u8[8192]{0}', space=vmem, size = 0x2000, scoped, tag = 'input window, operand 1, single buffered']
    #allocation6 [shape = 's32[1]{0}', space=sflag, size = 0x4, scoped, tag = 'scoped memory for tpu_custom_call.1']
    #allocation7 [shape = 'u8[16384]{0}', space=vmem, size = 0x4000, scoped, tag = 'output window, operand 0']
    %9 = vsyncpa [#allocation3], 0
    %s10 = scalar_lea.sflag [#allocation3], 1
    %11 = vsyncpa %s10, 0
    %12 = vsyncpa [#allocation6], 0
    %13 = vsyncpa [#allocation4], 0
    %s14 = scalar_lea.sflag [#allocation4], 1
    %15 = vsyncpa %s14, 0
    loop: start=0, step=1, limit=4
    $region2: #{tpu_custom_call.1} parent=1 // loop_pre_header
      _
    $region3: #{tpu_custom_call.1} parent=1 // loop_header
      %s17 = sphi 0, %s21
      %p18 = scmp.ge.s32.totalorder %s17, 4
      %s24 = sphi 0, %s36
      %s25 = sphi 0, %s32
      %s26 = sphi 0, %s24
      %s27 = sphi 0, %s25
      %s28 = sphi 0, %s26
      %s29 = sphi 0, %s27
      %s41 = sphi 0, %s43
      %s44 = sphi 0, %s41
      %s45 = sphi 0, %s44
      %s61 = sphi 0, %s45
      %s67 = sphi 0, %s69
      %s70 = sphi 0, %s67
      %s71 = sphi 0, %s70
      %s87 = sphi 0, %s71
      %s91 = sphi 0, %s91
      %s93 = sphi 0, %s91
      %s94 = sphi 0, %s93
      %s108 = sphi 0, %s94
      %s112 = sphi 0, %s112
      %s114 = sphi 0, %s112
      %s115 = sphi 0, %s114
      %s129 = sphi 0, %s115
      %s137 = sphi 0, %s139
      %s140 = sphi 0, %s137
      %s141 = sphi 0, %s140
      %s157 = sphi 0, %s141
    $region4: #{tpu_custom_call.1} parent=1 // loop_header_branch
      %20 = sbr.rel (%p18) target = $region8
    $region5: #{tpu_custom_call.1} parent=1 // loop_body
      %s22 = ssub.s32 %s17, 1
      %s23 = ssub.s32 %s17, 2
      %s30 = sadd.s32 1, %s25
      %p31 = scmp.ge.s32.totalorder %s30, 1
      %s32 = scalar_select %p31, 0, %s30
      %s33 = sadd.s32 1, %s24
      %s34 = scalar_select %p31, %s33, %s24
      %p35 = scmp.ge.s32.totalorder %s34, 2
      %s36 = scalar_select %p35, 0, %s34
      %s37 = ssub.s32 %s24, %s36
      %s38 = ssub.s32 %s25, %s32
      %s39 = sor.u32 %s37, %s38
      %p40 = scmp.eq.s32.totalorder %s39, 0
      %s42 = sadd.s32 %s41, 1
      %s43 = scalar_select %p40, %s41, %s42
      %p46 = pneg %p40
      %p47 = scmp.eq.s32.totalorder %s17, 1
      %p48 = por %p46, %p47
      %p49 = scmp.ne.s32.totalorder %s41, %s44
      %p50 = scmp.eq.s32.totalorder %s17, 0
      %p51 = por %p49, %p50
      %p52 = scmp.ne.s32.totalorder %s41, %s44
      %p53 = scmp.eq.s32.totalorder %s22, 1
      %p54 = por %p52, %p53
      %p55 = scmp.ne.s32.totalorder %s44, %s45
      %p56 = scmp.eq.s32.totalorder %s22, 0
      %p57 = por %p55, %p56
      %p58 = scmp.ne.s32.totalorder %s44, %s45
      %p59 = scmp.eq.s32.totalorder %s23, 1
      %p60 = por %p58, %p59
      %p62 = scmp.ne.s32.totalorder %s45, %s61
      %p63 = scmp.eq.s32.totalorder %s23, 0
      %p64 = por %p62, %p63
      %s65 = ssub.s32 %s25, %s32
      %p66 = scmp.eq.s32.totalorder %s65, 0
      %s68 = sadd.s32 %s67, 1
      %s69 = scalar_select %p66, %s67, %s68
      %p72 = pneg %p66
      %p73 = scmp.eq.s32.totalorder %s17, 1
      %p74 = por %p72, %p73
      %p75 = scmp.ne.s32.totalorder %s67, %s70
      %p76 = scmp.eq.s32.totalorder %s17, 0
      %p77 = por %p75, %p76
      %p78 = scmp.ne.s32.totalorder %s67, %s70
      %p79 = scmp.eq.s32.totalorder %s22, 1
      %p80 = por %p78, %p79
      %p81 = scmp.ne.s32.totalorder %s70, %s71
      %p82 = scmp.eq.s32.totalorder %s22, 0
      %p83 = por %p81, %p82
      %p84 = scmp.ne.s32.totalorder %s70, %s71
      %p85 = scmp.eq.s32.totalorder %s23, 1
      %p86 = por %p84, %p85
      %p88 = scmp.ne.s32.totalorder %s71, %s87
      %p89 = scmp.eq.s32.totalorder %s23, 0
      %p90 = por %p88, %p89
      %s92 = sadd.s32 %s91, 1
      %p95 = scmp.eq.s32.totalorder %s17, 1
      %p96 = scmp.ne.s32.totalorder %s91, %s93
      %p97 = scmp.eq.s32.totalorder %s17, 0
      %p98 = por %p96, %p97
      %p99 = scmp.ne.s32.totalorder %s91, %s93
      %p100 = scmp.eq.s32.totalorder %s22, 1
      %p101 = por %p99, %p100
      %p102 = scmp.ne.s32.totalorder %s93, %s94
      %p103 = scmp.eq.s32.totalorder %s22, 0
      %p104 = por %p102, %p103
      %p105 = scmp.ne.s32.totalorder %s93, %s94
      %p106 = scmp.eq.s32.totalorder %s23, 1
      %p107 = por %p105, %p106
      %p109 = scmp.ne.s32.totalorder %s94, %s108
      %p110 = scmp.eq.s32.totalorder %s23, 0
      %p111 = por %p109, %p110
      %s113 = sadd.s32 %s112, 1
      %p116 = scmp.eq.s32.totalorder %s17, 1
      %p117 = scmp.ne.s32.totalorder %s112, %s114
      %p118 = scmp.eq.s32.totalorder %s17, 0
      %p119 = por %p117, %p118
      %p120 = scmp.ne.s32.totalorder %s112, %s114
      %p121 = scmp.eq.s32.totalorder %s22, 1
      %p122 = por %p120, %p121
      %p123 = scmp.ne.s32.totalorder %s114, %s115
      %p124 = scmp.eq.s32.totalorder %s22, 0
      %p125 = por %p123, %p124
      %p126 = scmp.ne.s32.totalorder %s114, %s115
      %p127 = scmp.eq.s32.totalorder %s23, 1
      %p128 = por %p126, %p127
      %p130 = scmp.ne.s32.totalorder %s115, %s129
      %p131 = scmp.eq.s32.totalorder %s23, 0
      %p132 = por %p130, %p131
      %s133 = ssub.s32 %s24, %s36
      %s134 = ssub.s32 %s25, %s32
      %s135 = sor.u32 %s133, %s134
      %p136 = scmp.eq.s32.totalorder %s135, 0
      %s138 = sadd.s32 %s137, 1
      %s139 = scalar_select %p136, %s137, %s138
      %p142 = pneg %p136
      %p143 = scmp.eq.s32.totalorder %s17, 1
      %p144 = por %p142, %p143
      %p145 = scmp.ne.s32.totalorder %s137, %s140
      %p146 = scmp.eq.s32.totalorder %s17, 0
      %p147 = por %p145, %p146
      %p148 = scmp.ne.s32.totalorder %s137, %s140
      %p149 = scmp.eq.s32.totalorder %s22, 1
      %p150 = por %p148, %p149
      %p151 = scmp.ne.s32.totalorder %s140, %s141
      %p152 = scmp.eq.s32.totalorder %s22, 0
      %p153 = por %p151, %p152
      %p154 = scmp.ne.s32.totalorder %s140, %s141
      %p155 = scmp.eq.s32.totalorder %s23, 1
      %p156 = por %p154, %p155
      %p158 = scmp.ne.s32.totalorder %s141, %s157
      %p159 = scmp.eq.s32.totalorder %s23, 0
      %p160 = por %p158, %p159
      %p161 = scmp.le.s32.totalorder 1, %s17
      %p162 = scmp.lt.s32.totalorder %s17, 3
      %p163 = pnand %p161, %p162
      %p164 = pneg %p163
      // Predicated region
      $region9: #{tpu_custom_call.1} parent=5 // pred_check
        _
      $region10: #{tpu_custom_call.1} parent=5 // pred_check_branch
        %166 = sbr.rel (%p163) target = $region12
      $region11: #{tpu_custom_call.1} parent=5 // pred_region
        %s167 = ssub.s32 %s17, 1
        // Predicated region
        $region13: #{tpu_custom_call.1} parent=11 // pred_check
          %p168 = pneg %p83
        $region14: #{tpu_custom_call.1} parent=11 // pred_check_branch
          %170 = sbr.rel (%p168) target = $region16
        $region15: #{tpu_custom_call.1} parent=11 // pred_region
          %s171 = smul.u32 2, %s27
          %173 = vsyncadd [#allocation6], 0
          %s174 = smul.addr %s171, 8
          %s175 = scalar_lea.hbm %s1, %s174
          %s176 = sshll.u32 %s175, 4
          %s177 = int_to_ptr.hbm [resolvable:$true] %s176
          %s178 = sshll.u32 [#allocation5], 4
          %s179 = int_to_ptr.vmem [resolvable:$true] %s178
          %184 = dma.hbm_to_vmem [thread:$0]  %s177, 256, %s179, [#allocation6], 128, 128, 8
        $region16: #{tpu_custom_call.1} parent=11 // pred_fallthru
          _
        // Predicated region
        $region17: #{tpu_custom_call.1} parent=11 // pred_check
          %p185 = pneg %p104
        $region18: #{tpu_custom_call.1} parent=11 // pred_check_branch
          %187 = sbr.rel (%p185) target = $region20
        $region19: #{tpu_custom_call.1} parent=11 // pred_region
          _
        $region20: #{tpu_custom_call.1} parent=11 // pred_fallthru
          _
        // Predicated region
        $region21: #{tpu_custom_call.1} parent=11 // pred_check
          %p188 = pneg %p125
        $region22: #{tpu_custom_call.1} parent=11 // pred_check_branch
          %190 = sbr.rel (%p188) target = $region24
        $region23: #{tpu_custom_call.1} parent=11 // pred_region
          _
        $region24: #{tpu_custom_call.1} parent=11 // pred_fallthru
          _
      $region12: #{tpu_custom_call.1} parent=5 // pred_fallthru
        _
      %p191 = scmp.lt.s32.totalorder %s17, 2
      // Predicated region
      $region25: #{tpu_custom_call.1} parent=5 // pred_check
        %p192 = pneg %p191
      $region26: #{tpu_custom_call.1} parent=5 // pred_check_branch
        %194 = sbr.rel (%p192) target = $region28
      $region27: #{tpu_custom_call.1} parent=5 // pred_region
        // Predicated region
        $region29: #{tpu_custom_call.1} parent=27 // pred_check
          %p195 = pneg %p51
        $region30: #{tpu_custom_call.1} parent=27 // pred_check_branch
          %197 = sbr.rel (%p195) target = $region32
        $region31: #{tpu_custom_call.1} parent=27 // pred_region
          %s198 = sand.u32 %s41, 1
          %s199 = scalar_lea.sflag [#allocation3], %s198
          %s200 = sand.u32 %s41, 1
          %s201 = smul.addr %s200, 16
          %s202 = scalar_lea.vmem [#allocation2], %s201
          %s203 = smul.u32 2, %s25
          %205 = vsyncadd %s199, 0
          %s206 = smul.addr %s24, 2
          %s207 = sadd.s32 %s203, %s206
          %s208 = smul.addr %s207, 8
          %s209 = scalar_lea.hbm %s0, %s208
          %s210 = sshll.u32 %s209, 4
          %s211 = int_to_ptr.hbm [resolvable:$true] %s210
          %s212 = sshll.u32 %s202, 4
          %s213 = int_to_ptr.vmem [resolvable:$true] %s212
          %218 = dma.hbm_to_vmem [thread:$0]  %s211, 256, %s213, %s199, 128, 128, 8
        $region32: #{tpu_custom_call.1} parent=27 // pred_fallthru
          _
      $region28: #{tpu_custom_call.1} parent=5 // pred_fallthru
        _
      %p219 = scmp.le.s32.totalorder 1, %s17
      %p220 = scmp.lt.s32.totalorder %s17, 3
      %p221 = pnand %p219, %p220
      %p222 = pneg %p221
      // Predicated region
      $region33: #{tpu_custom_call.1} parent=5 // pred_check
        _
      $region34: #{tpu_custom_call.1} parent=5 // pred_check_branch
        %224 = sbr.rel (%p221) target = $region36
      $region35: #{tpu_custom_call.1} parent=5 // pred_region
        %s225 = ssub.s32 %s17, 1
        %s226 = sand.u32 %s44, 1
        %s227 = scalar_lea.sflag [#allocation3], %s226
        %s228 = sand.u32 %s44, 1
        %s229 = smul.addr %s228, 16
        %s230 = scalar_lea.vmem [#allocation2], %s229
        // Predicated region
        $region37: #{tpu_custom_call.1} parent=35 // pred_check
          %p231 = pneg %p57
        $region38: #{tpu_custom_call.1} parent=35 // pred_check_branch
          %233 = sbr.rel (%p231) target = $region40
        $region39: #{tpu_custom_call.1} parent=35 // pred_region
          %235 = dma.done %s227, 256
        $region40: #{tpu_custom_call.1} parent=35 // pred_fallthru
          _
        // Predicated region
        $region41: #{tpu_custom_call.1} parent=35 // pred_check
          %p236 = pneg %p83
        $region42: #{tpu_custom_call.1} parent=35 // pred_check_branch
          %238 = sbr.rel (%p236) target = $region44
        $region43: #{tpu_custom_call.1} parent=35 // pred_region
          %240 = dma.done [#allocation6], 256
        $region44: #{tpu_custom_call.1} parent=35 // pred_fallthru
          _
        %s241 = sand.u32 %s44, 1
        %s242 = scalar_lea.sflag [#allocation3], %s241
        %s243 = sand.u32 %s44, 1
        %s244 = smul.addr %s243, 16
        %s245 = scalar_lea.vmem [#allocation2], %s244
        %p246 = pneg %p57
        %p247 = pneg %p54
        %p248 = pneg %p83
        %p249 = pneg %p80
        %p250 = pneg %p104
        %p251 = pneg %p101
        %p252 = pneg %p125
        %p253 = pneg %p122
        %p254 = pneg %p153
        %p255 = pneg %p150
        %s256 = sand.u32 %s140, 1
        %s257 = scalar_lea.sflag [#allocation4], %s256
        %s258 = sand.u32 %s140, 1
        %s259 = smul.addr %s258, 16
        %s260 = scalar_lea.vmem [#allocation7], %s259
        %s261 = smul.u32 2, %s27
        %s262 = smul.u32 2, %s27
        %s263 = smul.u32 2, %s27
        %v264 = vld [vmem:[%s230] sm:$0xff]
        %v265 = vld [vmem:[%s230 + $0x8] sm:$0xff]
        %v266 = vld [vmem:[#allocation5] sm:$0xff]
        %v267 = vld [vmem:[#allocation5 + $0x8] sm:$0xff]
        %v268 = vadd.f32 %v264, %v266
        %v269 = vadd.f32 %v265, %v267
        %v270 = vld [vmem:[%s2] sm:$0x1]
        %v271 = vld [vmem:[%s3] sm:$0x1]
        %272 = vadd.xlane.f32.xlu0 %v268
        %v273 = vpop.xlane.xlu0 %272
        %274 = vadd.xlane.f32.xlu0 %v269
        %v275 = vpop.xlane.xlu0 %274
        %v276 = vrcp.pop 128.0
        %v277 = vmul.f32 128.0, %v276
        %v278 = vsub.f32 1.0, %v277
        %v279 = vmul.f32 %v276, %v278
        %v280 = vadd.f32 %v276, %v279
        %vm281 = vweird.f32 %v276
        %v282 = vsel %vm281, %v276, %v280
        %v283 = vmul.f32 %v273, %v282
        %v284 = vmul.f32 %v275, %v282
        %v285 = vsub.f32 %v268, %v283
        %v286 = vsub.f32 %v269, %v284
        %v287 = vmul.f32 %v285, %v285
        %v288 = vmul.f32 %v286, %v286
        %289 = vadd.xlane.f32.xlu0 %v287
        %v290 = vpop.xlane.xlu0 %289
        %291 = vadd.xlane.f32.xlu0 %v288
        %v292 = vpop.xlane.xlu0 %291
        %v293 = vmul.f32 %v290, %v282
        %v294 = vmul.f32 %v292, %v282
        %v295 = vadd.f32 %v293, 1e-06
        %v296 = vadd.f32 %v294, 1e-06
        %v297 = vrsqrt.pop %v295
        %v298 = vmul.f32 %v297, %v295
        %v299 = vmul.f32 %v298, %v297
        %v300 = vmul.f32 0.5, %v299
        %v301 = vsub.f32 1.5, %v300
        %v302 = vmul.f32 %v297, %v301
        %vm303 = vweird.f32 %v295
        %vm304 = vweird.f32 %v297
        %vm305 = vmor %vm303, %vm304
        %v306 = vsel %vm305, %v297, %v302
        %v307 = vrsqrt.pop %v296
        %v308 = vmul.f32 %v307, %v296
        %v309 = vmul.f32 %v308, %v307
        %v310 = vmul.f32 0.5, %v309
        %v311 = vsub.f32 1.5, %v310
        %v312 = vmul.f32 %v307, %v311
        %vm313 = vweird.f32 %v296
        %vm314 = vweird.f32 %v307
        %vm315 = vmor %vm313, %vm314
        %v316 = vsel %vm315, %v307, %v312
        %v317 = vmul.f32 %v285, %v306
        %v318 = vmul.f32 %v286, %v316
        %v320 = vperm.slane %v270, 0
        %v322 = vmul.f32 %v317, %v320
        %v323 = vmul.f32 %v318, %v320
        %v325 = vperm.slane %v271, 0
        %v327 = vadd.f32 %v322, %v325
        %v328 = vadd.f32 %v323, %v325
        %329 = vst [vmem:[%s260] sm:$0xff] %v327
        %330 = vst [vmem:[%s260 + $0x8] sm:$0xff] %v328
        %s331 = sand.u32 %s140, 1
        %s332 = scalar_lea.sflag [#allocation4], %s331
        %s333 = sand.u32 %s140, 1
        %s334 = smul.addr %s333, 16
        %s335 = scalar_lea.vmem [#allocation7], %s334
        // Predicated region
        $region45: #{tpu_custom_call.1} parent=35 // pred_check
          %p336 = pneg %p150
        $region46: #{tpu_custom_call.1} parent=35 // pred_check_branch
          %338 = sbr.rel (%p336) target = $region48
        $region47: #{tpu_custom_call.1} parent=35 // pred_region
          %s339 = smul.u32 2, %s27
          %341 = vsyncadd %s332, 0
          %s342 = smul.addr %s26, 2
          %s343 = sadd.s32 %s339, %s342
          %s344 = smul.addr %s343, 8
          %s345 = scalar_lea.hbm %s4, %s344
          %s346 = sshll.u32 %s335, 4
          %s347 = int_to_ptr.vmem [resolvable:$true] %s346
          %s348 = sshll.u32 %s345, 4
          %s349 = int_to_ptr.hbm [resolvable:$true] %s348
          %354 = dma.vmem_to_hbm [thread:$0]  %s347, 256, %s349, %s332, 128, 128, 8
        $region48: #{tpu_custom_call.1} parent=35 // pred_fallthru
          _
      $region36: #{tpu_custom_call.1} parent=5 // pred_fallthru
        _
      %p355 = scmp.le.s32.totalorder 2, %s17
      // Predicated region
      $region49: #{tpu_custom_call.1} parent=5 // pred_check
        %p356 = pneg %p355
      $region50: #{tpu_custom_call.1} parent=5 // pred_check_branch
        %358 = sbr.rel (%p356) target = $region52
      $region51: #{tpu_custom_call.1} parent=5 // pred_region
        %s359 = ssub.s32 %s17, 2
        // Predicated region
        $region53: #{tpu_custom_call.1} parent=51 // pred_check
          %p360 = pneg %p156
        $region54: #{tpu_custom_call.1} parent=51 // pred_check_branch
          %362 = sbr.rel (%p360) target = $region56
        $region55: #{tpu_custom_call.1} parent=51 // pred_region
          %s363 = sand.u32 %s141, 1
          %s364 = scalar_lea.sflag [#allocation4], %s363
          %s365 = sand.u32 %s141, 1
          %s366 = smul.addr %s365, 16
          %s367 = scalar_lea.vmem [#allocation7], %s366
          %369 = dma.done %s364, 256
        $region56: #{tpu_custom_call.1} parent=51 // pred_fallthru
          _
      $region52: #{tpu_custom_call.1} parent=5 // pred_fallthru
        _
    $region6: #{tpu_custom_call.1} parent=1 // loop_footer
      %s21 = sadd.s32 1, %s17
    $region7: #{tpu_custom_call.1} parent=1 // loop_footer_branch
      %16 = sbr.rel target = $region3
    $region8: #{tpu_custom_call.1} parent=1 // loop_exit
      _
    %370 = vsyncpa [#allocation3], 1
    %s371 = scalar_lea.sflag [#allocation3], 1
    %372 = vsyncpa %s371, 1
    %373 = vsyncpa [#allocation6], 1
    %374 = vsyncpa [#allocation4], 1
    %s375 = scalar_lea.sflag [#allocation4], 1
    %376 = vsyncpa %s375, 1

</llo_original>
